<compile_context>
chip_gen: v5e
topology: v5e:2x2
jax: 0.10.0
libtpu: 0.0.40
codegen_flags: <defaults>
</compile_context>

<pallas_src>
import jax
import jax.numpy as jnp
from jax.experimental import pallas as pl
from jax.experimental.pallas import tpu as pltpu


# --------------------------------------------------------------------------
# Kernels
# --------------------------------------------------------------------------

def _onehot_ce_dense_kernel(x_ref, t_ref, o_ref):
    """Dense-target path.  x_ref, t_ref: (TN, C) VMEM blocks; o_ref: (TN, 1)."""
    x = x_ref[...].astype(jnp.float32)
    t = t_ref[...].astype(jnp.float32)

    # Numerically-stable log-sum-exp over the class (lane) axis.
    m = jnp.max(x, axis=-1, keepdims=True)
    lse = jnp.log(jnp.sum(jnp.exp(x - m), axis=-1, keepdims=True))

    # Fused: sum((x - m - lse) * t) == sum(x*t) - (m + lse) * sum(t).
    # Avoids materializing a second (TN, C) f32 temporary + broadcast-sub.
    # NOTE: like the PyTorch reference, x == -inf where t == 0 gives NaN.
    s_xt = jnp.sum(x * t, axis=-1, keepdims=True)
    s_t = jnp.sum(t, axis=-1, keepdims=True)
    o_ref[...] = s_xt - (m + lse) * s_t


def _onehot_ce_label_kernel(x_ref, lab_ref, o_ref):
    """One-hot fast path.  x_ref: (TN, C); lab_ref: (TN, 1) int32; o: (TN, 1)."""
    x = x_ref[...].astype(jnp.float32)
    lab = lab_ref[...]                                      # (TN, 1) int32

    m = jnp.max(x, axis=-1, keepdims=True)
    lse = jnp.log(jnp.sum(jnp.exp(x - m), axis=-1, keepdims=True))

    # Pick x[row, label[row]] via a lane-iota compare + select (no t stream,
    # no x*t multiply, no sum(t)); s_t is hard-coded to 1 for one-hot targets.
    cls = jax.lax.broadcasted_iota(jnp.int32, x.shape, 1)   # class index/lane
    picked = jnp.sum(jnp.where(cls == lab, x, 0.0), axis=-1, keepdims=True)
    o_ref[...] = picked - (m + lse)


# --------------------------------------------------------------------------
# Tiling / VMEM budgeting
# --------------------------------------------------------------------------

def _vmem_budget():
    """(combined streamed bytes per block target, vmem_limit_bytes).

    v7x has 64 MiB VMEM per TensorCore -> small blocks (double-buffered
    operands + the f32 in-kernel intermediates must all fit).  v5e/v6e have
    128 MiB -> bigger blocks, fewer per-step overheads, longer DMAs.
    """
    try:
        cap = int(pltpu.get_tpu_info().vmem_capacity_bytes)
    except Exception:
        cap = 64 * 1024 * 1024  # conservative fallback (assume v7x-sized VMEM)
    if cap <= 64 * 1024 * 1024:                      # v7x
        return 4 * 1024 * 1024, 48 * 1024 * 1024
    return 12 * 1024 * 1024, 96 * 1024 * 1024        # v5e / v6e


def _choose_tile_rows(n, streamed_bytes_per_row, target_bytes):
    """Pick TN (rows per block): sublane-aligned, capped by the row count."""
    tn = target_bytes // max(1, streamed_bytes_per_row)
    tn = max(8, (int(tn) // 8) * 8)
    n_up8 = -(-n // 8) * 8
    return max(8, min(tn, 4096, n_up8))


def _row_tiled_call(kernel, inputs, aux, aux_block_cols, tile_rows):
    """Shared pallas_call plumbing: 1-D row-tile grid, no padding (OOB tail)."""
    N, C = inputs.shape
    target_bytes, vmem_limit = _vmem_budget()
    if tile_rows is None:
        bpr = C * jnp.dtype(inputs.dtype).itemsize
        bpr += aux_block_cols * jnp.dtype(aux.dtype).itemsize * (
            C if aux_block_cols == C else 1)
        TN = _choose_tile_rows(N, bpr, target_bytes)
    else:
        assert tile_rows > 0 and tile_rows % 8 == 0, "tile_rows must be a multiple of 8"
        TN = tile_rows

    out = pl.pallas_call(
        kernel,
        out_shape=jax.ShapeDtypeStruct((N, 1), jnp.float32),
        grid_spec=pltpu.PrefetchScalarGridSpec(
            num_scalar_prefetch=0,
            grid=(pl.cdiv(N, TN),),          # tail block overhangs; no pad copy
            in_specs=[
                pl.BlockSpec((TN, C), lambda i: (i, 0)),
                pl.BlockSpec((TN, aux_block_cols), lambda i: (i, 0)),
            ],
            out_specs=pl.BlockSpec((TN, 1), lambda i: (i, 0)),
        ),
        compiler_params=pltpu.CompilerParams(
            # Row tiles are independent -> megacore-shardable.
            dimension_semantics=("parallel",),
            vmem_limit_bytes=vmem_limit,
        ),
    )(inputs, aux)
    return out.reshape(N)


# --------------------------------------------------------------------------
# Public wrappers
# --------------------------------------------------------------------------

def onehot_cross_entropy_loss(inputs, target, *, tile_rows=None):
    """Equivalent of OnehotCrossEntropyLoss()(input, target) with default args.

    inputs, target: (N, C) float arrays (target may be soft). Returns (N,) f32.
    weight=None -> no scaling; ignore_index branch is dead; size_average=False.
    """
    assert inputs.ndim == 2 and inputs.shape == target.shape
    return _row_tiled_call(_onehot_ce_dense_kernel, inputs, target,
                           aux_block_cols=inputs.shape[1], tile_rows=tile_rows)


def onehot_cross_entropy_loss_from_labels(inputs, labels, *, tile_rows=None):
    """Fast path when the target is a true one-hot encoding of `labels`.

    inputs: (N, C); labels: (N,) int in [0, C). Streams ~half the HBM bytes
    of the dense path. Returns (N,) float32, identical to the dense result
    for one-hot targets.
    """
    N, C = inputs.shape
    assert labels.shape == (N,)
    labels2 = labels.astype(jnp.int32).reshape(N, 1)
    return _row_tiled_call(_onehot_ce_label_kernel, inputs, labels2,
                           aux_block_cols=1, tile_rows=tile_rows)


# --------------------------------------------------------------------------
# Reference + self-test
# --------------------------------------------------------------------------

def _reference(inputs, target):
    x = inputs.astype(jnp.float32)
    log_p = jax.nn.log_softmax(x, axis=1)
    return jnp.sum(log_p * target.astype(jnp.float32), axis=1)


if __name__ == "__main__":
    key = jax.random.PRNGKey(0)
    k1, k2, k3, k4, k5, k6 = jax.random.split(key, 6)

    # Case 1: small f32 one-hot (N=8, C=32): dense path and label fast path.
    N1, C1 = 8, 32
    x1 = jax.random.normal(k1, (N1, C1), dtype=jnp.float32)
    labels1 = jax.random.randint(k2, (N1,), 0, C1)
    t1 = jax.nn.one_hot(labels1, C1, dtype=jnp.float32)
    out1 = jax.block_until_ready(onehot_cross_entropy_loss(x1, t1))
    out1l = jax.block_until_ready(onehot_cross_entropy_loss_from_labels(x1, labels1))
    ref1 = _reference(x1, t1)
    assert out1.shape == (N1,)
    assert jnp.allclose(out1, ref1, atol=1e-5, rtol=1e-5), (out1, ref1)
    assert jnp.allclose(out1l, ref1, atol=1e-5, rtol=1e-5), (out1l, ref1)

    # Case 2: bf16 inputs, soft targets, N not a multiple of 8 (OOB tail rows).
    N2, C2 = 10, 64
    x2 = jax.random.normal(k3, (N2, C2), dtype=jnp.float32).astype(jnp.bfloat16)
    t2 = jax.nn.softmax(jax.random.normal(k4, (N2, C2), dtype=jnp.float32), axis=1)
    out2 = jax.block_until_ready(onehot_cross_entropy_loss(x2, t2))
    ref2 = _reference(x2, t2)
    assert out2.shape == (N2,)
    assert jnp.allclose(out2, ref2, atol=2e-4, rtol=2e-4), (out2, ref2)

    # Case 3: multi-tile grid with an overhanging tail block (N=20, TN=8):
    # exercises the no-pad path (garbage confined to masked tail rows) across
    # several grid steps, for both the dense and label kernels.
    N3, C3 = 20, 128
    x3 = jax.random.normal(k5, (N3, C3), dtype=jnp.float32)
    labels3 = jax.random.randint(k6, (N3,), 0, C3)
    t3 = jax.nn.one_hot(labels3, C3, dtype=jnp.float32)
    out3 = jax.block_until_ready(onehot_cross_entropy_loss(x3, t3, tile_rows=8))
    out3l = jax.block_until_ready(
        onehot_cross_entropy_loss_from_labels(x3, labels3, tile_rows=8))
    ref3 = _reference(x3, t3)
    assert out3.shape == (N3,)
    assert jnp.allclose(out3, ref3, atol=1e-5, rtol=1e-5), (out3, ref3)
    assert jnp.allclose(out3l, ref3, atol=1e-5, rtol=1e-5), (out3l, ref3)

    print("KERNEL_OK")
</pallas_src>

<mosaic_0001>
module attributes {stable_mosaic.version = 11 : i64} {
  func.func @_onehot_ce_dense_kernel(%arg0: i32, %arg1: memref<8x32xf32, #tpu.memory_space<vmem>>, %arg2: memref<8x32xf32, #tpu.memory_space<vmem>>, %arg3: memref<8x1xf32, #tpu.memory_space<vmem>>) attributes {dimension_semantics = [#tpu.dimension_semantics<parallel>], iteration_bounds = array<i64: 1>, scalar_prefetch = 0 : i64, scratch_operands = 0 : i64, tpu.core_type = #tpu.core_type<tc>, window_params = [{transform_indices = @transform_0, window_bounds = array<i64: 8, 32>}, {transform_indices = @transform_1, window_bounds = array<i64: 8, 32>}, {transform_indices = @transform_2, window_bounds = array<i64: 8, 1>}]} {
    %c0 = arith.constant 0 : index
    %c0_0 = arith.constant 0 : index
    %0 = vector.load %arg1[%c0, %c0_0] : memref<8x32xf32, #tpu.memory_space<vmem>>, vector<8x32xf32>
    %c0_1 = arith.constant 0 : index
    %c0_2 = arith.constant 0 : index
    %1 = vector.load %arg2[%c0_1, %c0_2] : memref<8x32xf32, #tpu.memory_space<vmem>>, vector<8x32xf32>
    %cst = arith.constant dense<0xFF800000> : vector<8xf32>
    %2 = vector.multi_reduction <maximumf>, %0, %cst [1] : vector<8x32xf32> to vector<8xf32>
    %3 = vector.shape_cast %2 : vector<8xf32> to vector<8x1xf32>
    %4 = vector.broadcast %3 : vector<8x1xf32> to vector<8x32xf32>
    %5 = arith.subf %0, %4 : vector<8x32xf32>
    %6 = math.exp %5 : vector<8x32xf32>
    %cst_3 = arith.constant dense<0.000000e+00> : vector<8xf32>
    %7 = vector.multi_reduction <add>, %6, %cst_3 [1] : vector<8x32xf32> to vector<8xf32>
    %8 = vector.shape_cast %7 : vector<8xf32> to vector<8x1xf32>
    %9 = math.log %8 : vector<8x1xf32>
    %10 = arith.mulf %0, %1 : vector<8x32xf32>
    %cst_4 = arith.constant dense<0.000000e+00> : vector<8xf32>
    %11 = vector.multi_reduction <add>, %10, %cst_4 [1] : vector<8x32xf32> to vector<8xf32>
    %12 = vector.shape_cast %11 : vector<8xf32> to vector<8x1xf32>
    %cst_5 = arith.constant dense<0.000000e+00> : vector<8xf32>
    %13 = vector.multi_reduction <add>, %1, %cst_5 [1] : vector<8x32xf32> to vector<8xf32>
    %14 = vector.shape_cast %13 : vector<8xf32> to vector<8x1xf32>
    %15 = arith.addf %3, %9 : vector<8x1xf32>
    %16 = arith.mulf %15, %14 : vector<8x1xf32>
    %17 = arith.subf %12, %16 : vector<8x1xf32>
    %c0_6 = arith.constant 0 : index
    %c0_7 = arith.constant 0 : index
    %18 = vector.load %arg3[%c0_6, %c0_7] : memref<8x1xf32, #tpu.memory_space<vmem>>, vector<8x1xf32>
    tpu.vector_store %arg3[%c0_6, %c0_7], %17 {strides = array<i32>} : memref<8x1xf32, #tpu.memory_space<vmem>>, vector<8x1xf32>,
    return
  }
  func.func @transform_0(%arg0: i32) -> (i32, i32) {
    %c0_i32 = arith.constant 0 : i32
    %c0_i32_0 = arith.constant 0 : i32
    return %arg0, %c0_i32 : i32, i32
  }
  func.func @transform_1(%arg0: i32) -> (i32, i32) {
    %c0_i32 = arith.constant 0 : i32
    %c0_i32_0 = arith.constant 0 : i32
    return %arg0, %c0_i32 : i32, i32
  }
  func.func @transform_2(%arg0: i32) -> (i32, i32) {
    %c0_i32 = arith.constant 0 : i32
    %c0_i32_0 = arith.constant 0 : i32
    return %arg0, %c0_i32 : i32, i32
  }
}

</mosaic_0001>

<llo_original>
// kernel: tpu_custom_call.1
$region0: #{tpu_custom_call.1}
  #allocation0 [shape = 'u32[]', space=smem, size = 0x4, offset = 0x4, fixed_abs, tag = 'smem constant byte address 0x4 - core index']
  #allocation1 [shape = 'u32[72,128]{1,0:T(1,128)}', space=vmem, size = 0x9000, scoped, tag = 'internal scratch']
  %s0 = inlined_call_operand.hbm [shape: f32[8,32], index: 0, kind: input, shape index: {}]
  %s1 = inlined_call_operand.hbm [shape: f32[8,32], index: 1, kind: input, shape index: {}]
  %s2 = inlined_call_operand.vmem [shape: f32[8,1], index: 2, kind: output, shape index: {}]
  %s3 = sld [smem:[#allocation0]]
  $region26: #{tpu_custom_call.1} parent=0
    _
  %s5 = ssub.s32 1, %s3
  %s6 = scalar_select 0, %s5, %s3
  $region1: #{tpu_custom_call.1} parent=0
    #allocation2 [shape = 'u8[4096]{0}', space=vmem, size = 0x1000, scoped, tag = 'input window, operand 0, single buffered']
    #allocation3 [shape = 's32[1]{0}', space=sflag, size = 0x4, scoped, tag = 'scoped memory for tpu_custom_call.1']
    #allocation4 [shape = 'u8[4096]{0}', space=vmem, size = 0x1000, scoped, tag = 'input window, operand 1, single buffered']
    #allocation5 [shape = 's32[1]{0}', space=sflag, size = 0x4, scoped, tag = 'scoped memory for tpu_custom_call.1']
    %7 = vsyncpa [#allocation3], 0
    %8 = vsyncpa [#allocation5], 0
    // Predicated region
    $region2: #{tpu_custom_call.1} parent=1 // pred_check
      _
    $region3: #{tpu_custom_call.1} parent=1 // pred_check_branch
      %10 = sbr.rel (0) target = $region5
    $region4: #{tpu_custom_call.1} parent=1 // pred_region
      %12 = vsyncadd [#allocation3], 0
      %s14 = sshll.u32 %s0, 4
      %s15 = int_to_ptr.hbm [resolvable:$true] %s14
      %s16 = sshll.u32 [#allocation2], 4
      %s17 = int_to_ptr.vmem [resolvable:$true] %s16
      %19 = dma.hbm_to_vmem [thread:$0]  %s15, 128, %s17, [#allocation3]
    $region5: #{tpu_custom_call.1} parent=1 // pred_fallthru
      _
    // Predicated region
    $region6: #{tpu_custom_call.1} parent=1 // pred_check
      _
    $region7: #{tpu_custom_call.1} parent=1 // pred_check_branch
      %21 = sbr.rel (0) target = $region9
    $region8: #{tpu_custom_call.1} parent=1 // pred_region
      %23 = vsyncadd [#allocation5], 0
      %s25 = sshll.u32 %s1, 4
      %s26 = int_to_ptr.hbm [resolvable:$true] %s25
      %s27 = sshll.u32 [#allocation4], 4
      %s28 = int_to_ptr.vmem [resolvable:$true] %s27
      %30 = dma.hbm_to_vmem [thread:$0]  %s26, 128, %s28, [#allocation5]
    $region9: #{tpu_custom_call.1} parent=1 // pred_fallthru
      _
    // Predicated region
    $region10: #{tpu_custom_call.1} parent=1 // pred_check
      _
    $region11: #{tpu_custom_call.1} parent=1 // pred_check_branch
      %32 = sbr.rel (0) target = $region13
    $region12: #{tpu_custom_call.1} parent=1 // pred_region
      %34 = dma.done [#allocation3], 128
    $region13: #{tpu_custom_call.1} parent=1 // pred_fallthru
      _
    // Predicated region
    $region14: #{tpu_custom_call.1} parent=1 // pred_check
      _
    $region15: #{tpu_custom_call.1} parent=1 // pred_check_branch
      %36 = sbr.rel (0) target = $region17
    $region16: #{tpu_custom_call.1} parent=1 // pred_region
      %38 = dma.done [#allocation5], 128
    $region17: #{tpu_custom_call.1} parent=1 // pred_fallthru
      _
    %v39 = vld [vmem:[#allocation2] sm:$0xff]
    %v40 = vld [vmem:[#allocation4] sm:$0xff]
    %vm41 = vcmask 261120
    %v42 = vsel %vm41, %v39, -inf
    %43 = vmax.xlane.f32.xlu0 %v42
    %v44 = vpop.xlane.xlu0 %43
    %v45 = vsub.f32 %v39, %v44
    %v46 = vmul.f32 %v45, 1.442695
    %v47 = vpow.pop %v46
    %v48 = vsel %vm41, %v47, 0.0
    %49 = vadd.xlane.f32.xlu0 %v48
    %v50 = vpop.xlane.xlu0 %49
    %v51 = vlog2.pop %v50
    %v52 = vmul.f32 %v51, 0.6931472
    %v53 = vmul.f32 %v39, %v40
    %v54 = vsel %vm41, %v53, 0.0
    %55 = vadd.xlane.f32.xlu0 %v54
    %v56 = vpop.xlane.xlu0 %55
    %v57 = vsel %vm41, %v40, 0.0
    %58 = vadd.xlane.f32.xlu0 %v57
    %v59 = vpop.xlane.xlu0 %58
    %v60 = vadd.f32 %v44, %v52
    %v61 = vmul.f32 %v60, %v59
    %v62 = vsub.f32 %v56, %v61
    %vm63 = vcmask 7168
    %64 = vst.msk [vmem:[%s2] sm:$0xff] %vm63, %v62
    // Predicated region
    $region18: #{tpu_custom_call.1} parent=1 // pred_check
      _
    $region19: #{tpu_custom_call.1} parent=1 // pred_check_branch
      %66 = sbr.rel (0) target = $region21
    $region20: #{tpu_custom_call.1} parent=1 // pred_region
      _
    $region21: #{tpu_custom_call.1} parent=1 // pred_fallthru
      _
    // Predicated region
    $region22: #{tpu_custom_call.1} parent=1 // pred_check
      _
    $region23: #{tpu_custom_call.1} parent=1 // pred_check_branch
      %68 = sbr.rel (0) target = $region25
    $region24: #{tpu_custom_call.1} parent=1 // pred_region
      _
    $region25: #{tpu_custom_call.1} parent=1 // pred_fallthru
      _
    %69 = vsyncpa [#allocation3], 1
    %70 = vsyncpa [#allocation5], 1

</llo_original>
